<compile_context>
chip_gen: v5e
topology: v5e:2x2
jax: 0.10.0
libtpu: 0.0.40
codegen_flags: <defaults>
</compile_context>

<pallas_src>
import math

import jax
import jax.numpy as jnp
from jax import lax
from jax.experimental import pallas as pl
from jax.experimental.pallas import tpu as pltpu

_INV_SQRT2 = 1.0 / math.sqrt(2.0)

# Conservative VMEM working-set budget (double-buffered tiles) that fits the
# scoped-VMEM defaults of every TPU generation (v5e 16 MiB, v6e/v7x 32 MiB)
# once we raise vmem_limit_bytes below.
_VMEM_BUDGET = 24 << 20
_VMEM_LIMIT = 32 << 20


def _erf_gelu(z):
    # Exact (erf-based) BERT gelu, computed in f32.
    return z * 0.5 * (1.0 + lax.erf(z * _INV_SQRT2))


# ---------------------------------------------------------------------------
# Kernels
# ---------------------------------------------------------------------------
def _fused_kernel(x_ref, w_ref, b_ref, o_ref):
    """Scratch-free path: full K in one dot, bias + GELU fused into the store."""
    z = jnp.dot(x_ref[...], w_ref[...], preferred_element_type=jnp.float32)
    z = z + b_ref[...]                      # bias already f32
    o_ref[...] = _erf_gelu(z).astype(o_ref.dtype)


def _ktiled_kernel(x_ref, w_ref, b_ref, o_ref, acc_ref):
    """Fallback for very large H: K-tiled with an f32 VMEM accumulator."""
    k = pl.program_id(2)

    @pl.when(k == 0)
    def _():
        acc_ref[...] = jnp.zeros_like(acc_ref)

    acc_ref[...] += jnp.dot(
        x_ref[...], w_ref[...], preferred_element_type=jnp.float32
    )

    @pl.when(k == pl.num_programs(2) - 1)
    def _():
        z = acc_ref[...] + b_ref[...]
        o_ref[...] = _erf_gelu(z).astype(o_ref.dtype)


# ---------------------------------------------------------------------------
# Tile selection / padding helpers
# ---------------------------------------------------------------------------
def _round_up(x, m):
    return ((x + m - 1) // m) * m


def _vmem_bytes(tm, tn, tk, in_bytes, out_bytes, with_acc):
    x_b = tm * tk * in_bytes * 2          # double-buffered x tile
    w_b = tk * tn * in_bytes * 2          # double-buffered W^T tile
    b_b = tn * 4 * 2                      # double-buffered bias tile (f32)
    o_b = tm * tn * out_bytes * 2         # double-buffered output tile
    a_b = tm * tn * 4 if with_acc else 0  # f32 accumulator scratch
    return x_b + w_b + b_b + o_b + a_b


def _select_tiles(M, I_pad, H_pad, in_bytes, out_bytes, budget=_VMEM_BUDGET):
    # Row tile: 512 for large M, otherwise the (8-aligned) full extent.
    tm = 512 if M >= 512 else _round_up(M, 8)
    M_pad = _round_up(M, tm)

    # Column tile: largest 128-multiple candidate dividing the padded I
    # (larger tn = more x-reuse and fewer grid steps).
    tn = 128
    for cand in (2048, 1024, 512, 256, 128):
        if cand <= I_pad and I_pad % cand == 0:
            tn = cand
            break

    # Reduction tile: whole (padded) H by default -> scratch-free kernel.
    tk = H_pad

    def fits(tm_, tn_, tk_):
        return _vmem_bytes(tm_, tn_, tk_, in_bytes, out_bytes,
                           with_acc=(tk_ < H_pad)) <= budget

    # Shrink tn, then tk (K-tiling fallback), then tm until the set fits.
    while not fits(tm, tn, tk) and tn > 128:
        tn //= 2
    while not fits(tm, tn, tk) and tk % 256 == 0 and tk > 512:
        tk //= 2
    while not fits(tm, tn, tk) and tm > 8:
        tm = max(8, tm // 2)
        M_pad = _round_up(M, tm)

    # v7x has 2 TensorCores: make sure the parallel grid has >= 2 blocks
    # (shrink tn, not tm, to create more j blocks).  No-op on v5e/v6e.
    while (M_pad // tm) * (I_pad // tn) < 2 and tn >= 256:
        tn //= 2

    return tm, tn, tk, M_pad


# ---------------------------------------------------------------------------
# Parameter prep (one-time, at load) and forward
# ---------------------------------------------------------------------------
def prepare_params(weight, bias):
    """One-time prep of nn.Linear params.

    weight: [I, H] (PyTorch layout), bias: [I].
    Returns a dict with the pre-transposed, 128-padded weight [H_pad, I_pad],
    the f32 bias [1, I_pad], and the true output width I.
    """
    I, H = weight.shape
    H_pad = _round_up(H, 128)
    I_pad = _round_up(I, 128)
    w_t = jnp.zeros((H_pad, I_pad), weight.dtype).at[:H, :I].set(weight.T)
    b2d = jnp.zeros((1, I_pad), jnp.float32).at[0, :I].set(
        bias.astype(jnp.float32))
    return {"w_t": w_t, "b2d": b2d, "out_features": I}


def bert_intermediate(hidden_states, params, *, compute_dtype=None):
    """hidden_states: [..., H]; params from `prepare_params`."""
    w_t = params["w_t"]
    b2d = params["b2d"]
    I = params["out_features"]

    orig_shape = hidden_states.shape
    H = orig_shape[-1]
    H_pad, I_pad = w_t.shape
    out_dtype = hidden_states.dtype

    x = hidden_states.reshape(-1, H)
    M = x.shape[0]

    # Unify matmul input dtypes so the native MXU path is taken.
    if compute_dtype is not None:
        x = x.astype(compute_dtype)
        w_t = w_t.astype(compute_dtype)
    elif x.dtype != w_t.dtype:
        w_t = w_t.astype(x.dtype)

    in_bytes = jnp.dtype(x.dtype).itemsize
    out_bytes = jnp.dtype(out_dtype).itemsize

    tm, tn, tk, M_pad = _select_tiles(M, I_pad, H_pad, in_bytes, out_bytes)

    # Zero-pad activations to the tiled extents (exact: padded K columns hit
    # zero weight rows; padded M rows are sliced off below).
    if (M_pad, H_pad) != (M, H):
        x = jnp.pad(x, ((0, M_pad - M), (0, H_pad - H)))

    gm, gn, gk = M_pad // tm, I_pad // tn, H_pad // tk

    cost = pl.CostEstimate(
        flops=2 * M_pad * I_pad * H_pad,
        transcendentals=M_pad * I_pad,
        bytes_accessed=int(
            x.size * in_bytes + w_t.size * in_bytes + b2d.size * 4
            + M_pad * I_pad * out_bytes),
    )

    if gk == 1:
        # Preferred path: no K tiling, scratch-free fused kernel.
        grid_spec = pltpu.PrefetchScalarGridSpec(
            num_scalar_prefetch=0,
            grid=(gm, gn),
            in_specs=[
                pl.BlockSpec((tm, tk), lambda i, j: (i, 0)),   # x tile
                pl.BlockSpec((tk, tn), lambda i, j: (0, j)),   # W^T tile
                pl.BlockSpec((1, tn), lambda i, j: (0, j)),    # bias tile
            ],
            out_specs=pl.BlockSpec((tm, tn), lambda i, j: (i, j)),
        )
        out = pl.pallas_call(
            _fused_kernel,
            out_shape=jax.ShapeDtypeStruct((M_pad, I_pad), out_dtype),
            grid_spec=grid_spec,
            compiler_params=pltpu.CompilerParams(
                dimension_semantics=("parallel", "parallel"),
                vmem_limit_bytes=_VMEM_LIMIT,
            ),
            cost_estimate=cost,
        )(x, w_t, b2d)
    else:
        # Fallback for very large H: K-tiled accumulator kernel.
        grid_spec = pltpu.PrefetchScalarGridSpec(
            num_scalar_prefetch=0,
            grid=(gm, gn, gk),
            in_specs=[
                pl.BlockSpec((tm, tk), lambda i, j, k: (i, k)),
                pl.BlockSpec((tk, tn), lambda i, j, k: (k, j)),
                pl.BlockSpec((1, tn), lambda i, j, k: (0, j)),
            ],
            out_specs=pl.BlockSpec((tm, tn), lambda i, j, k: (i, j)),
            scratch_shapes=[pltpu.VMEM((tm, tn), jnp.float32)],
        )
        out = pl.pallas_call(
            _ktiled_kernel,
            out_shape=jax.ShapeDtypeStruct((M_pad, I_pad), out_dtype),
            grid_spec=grid_spec,
            compiler_params=pltpu.CompilerParams(
                dimension_semantics=("parallel", "parallel", "arbitrary"),
                vmem_limit_bytes=_VMEM_LIMIT,
            ),
            cost_estimate=cost,
        )(x, w_t, b2d)

    out = out[:M, :I]
    return out.reshape(*orig_shape[:-1], I)


# ---------------------------------------------------------------------------
# Self-test
# ---------------------------------------------------------------------------
if __name__ == "__main__":
    # Small deterministic example consistent with BertIntermediate's forward:
    # hidden_states is [batch, seq, hidden]; intermediate = 4 * hidden.
    batch, seq, hidden = 2, 8, 32
    intermediate = 4 * hidden  # 128

    key = jax.random.PRNGKey(0)
    k_x, k_w, k_b = jax.random.split(key, 3)

    hidden_states = jax.random.normal(k_x, (batch, seq, hidden), dtype=jnp.float32)
    # nn.Linear(hidden, intermediate): weight [intermediate, hidden], bias [intermediate]
    weight = jax.random.normal(k_w, (intermediate, hidden), dtype=jnp.float32) * 0.02
    bias = jax.random.normal(k_b, (intermediate,), dtype=jnp.float32) * 0.02

    # One-time parameter prep (transpose + pad + f32 bias), as at model load.
    params = prepare_params(weight, bias)

    # f32 path.
    out = bert_intermediate(hidden_states, params)
    out = jax.block_until_ready(out)

    # Pure-JAX reference: Linear + exact erf GELU.
    z = hidden_states @ weight.T + bias
    ref = z * 0.5 * (1.0 + lax.erf(z * _INV_SQRT2))

    assert out.shape == (batch, seq, intermediate)
    assert jnp.allclose(out, ref, atol=1e-2, rtol=1e-2)

    # bf16-MXU path (f32 accumulation / epilogue), looser tolerance.
    out_bf16 = bert_intermediate(hidden_states, params,
                                 compute_dtype=jnp.bfloat16)
    out_bf16 = jax.block_until_ready(out_bf16)
    assert out_bf16.shape == (batch, seq, intermediate)
    assert jnp.allclose(out_bf16, ref, atol=5e-2, rtol=5e-2)

    print("KERNEL_OK")
</pallas_src>

<mosaic_0001>
module attributes {stable_mosaic.version = 11 : i64} {
  func.func @_fused_kernel(%arg0: i32, %arg1: i32, %arg2: memref<16x128xf32, #tpu.memory_space<vmem>>, %arg3: memref<128x128xf32, #tpu.memory_space<vmem>>, %arg4: memref<1x128xf32, #tpu.memory_space<vmem>>, %arg5: memref<16x128xf32, #tpu.memory_space<vmem>>) attributes {dimension_semantics = [#tpu.dimension_semantics<parallel>, #tpu.dimension_semantics<parallel>], iteration_bounds = array<i64: 1, 1>, scalar_prefetch = 0 : i64, scratch_operands = 0 : i64, tpu.core_type = #tpu.core_type<tc>, window_params = [{transform_indices = @transform_0, window_bounds = array<i64: 16, 128>}, {transform_indices = @transform_1, window_bounds = array<i64: 128, 128>}, {transform_indices = @transform_2, window_bounds = array<i64: 1, 128>}, {transform_indices = @transform_3, window_bounds = array<i64: 16, 128>}]} {
    %c0 = arith.constant 0 : index
    %c0_0 = arith.constant 0 : index
    %0 = vector.load %arg2[%c0, %c0_0] : memref<16x128xf32, #tpu.memory_space<vmem>>, vector<16x128xf32>
    %c0_1 = arith.constant 0 : index
    %c0_2 = arith.constant 0 : index
    %1 = vector.load %arg3[%c0_1, %c0_2] : memref<128x128xf32, #tpu.memory_space<vmem>>, vector<128x128xf32>
    %cst = arith.constant dense<0.000000e+00> : vector<16x128xf32>
    %2 = tpu.matmul %0, %1, %cst {dimension_numbers = #tpu.dot_dimension_numbers<[1], [0], [0], [1], [0, 0, 1, 1], [], []>} : vector<16x128xf32>, vector<128x128xf32>, vector<16x128xf32> -> vector<16x128xf32>
    %c0_3 = arith.constant 0 : index
    %c0_4 = arith.constant 0 : index
    %3 = vector.load %arg4[%c0_3, %c0_4] : memref<1x128xf32, #tpu.memory_space<vmem>>, vector<1x128xf32>
    %4 = vector.broadcast %3 : vector<1x128xf32> to vector<16x128xf32>
    %5 = arith.addf %2, %4 : vector<16x128xf32>
    %cst_5 = arith.constant 5.000000e-01 : f32
    %6 = vector.broadcast %cst_5 : f32 to vector<16x128xf32>
    %7 = arith.mulf %5, %6 : vector<16x128xf32>
    %cst_6 = arith.constant 0.707106769 : f32
    %8 = vector.broadcast %cst_6 : f32 to vector<16x128xf32>
    %9 = arith.mulf %5, %8 : vector<16x128xf32>
    %10 = math.erf %9 : vector<16x128xf32>
    %cst_7 = arith.constant 1.000000e+00 : f32
    %11 = vector.broadcast %cst_7 : f32 to vector<16x128xf32>
    %12 = arith.addf %11, %10 : vector<16x128xf32>
    %13 = arith.mulf %7, %12 : vector<16x128xf32>
    %c0_8 = arith.constant 0 : index
    %c0_9 = arith.constant 0 : index
    %14 = vector.load %arg5[%c0_8, %c0_9] : memref<16x128xf32, #tpu.memory_space<vmem>>, vector<16x128xf32>
    tpu.vector_store %arg5[%c0_8, %c0_9], %13 {strides = array<i32>} : memref<16x128xf32, #tpu.memory_space<vmem>>, vector<16x128xf32>,
    return
  }
  func.func @transform_0(%arg0: i32, %arg1: i32) -> (i32, i32) {
    %c0_i32 = arith.constant 0 : i32
    %c0_i32_0 = arith.constant 0 : i32
    return %arg0, %c0_i32 : i32, i32
  }
  func.func @transform_1(%arg0: i32, %arg1: i32) -> (i32, i32) {
    %c0_i32 = arith.constant 0 : i32
    %c0_i32_0 = arith.constant 0 : i32
    return %c0_i32, %arg1 : i32, i32
  }
  func.func @transform_2(%arg0: i32, %arg1: i32) -> (i32, i32) {
    %c0_i32 = arith.constant 0 : i32
    %c0_i32_0 = arith.constant 0 : i32
    return %c0_i32, %arg1 : i32, i32
  }
  func.func @transform_3(%arg0: i32, %arg1: i32) -> (i32, i32) {
    %c0_i32 = arith.constant 0 : i32
    return %arg0, %arg1 : i32, i32
  }
}

</mosaic_0001>

<llo_original>
// kernel: tpu_custom_call.1
$region0: #{tpu_custom_call.1}
  #allocation0 [shape = 'u32[]', space=smem, size = 0x4, offset = 0x4, fixed_abs, tag = 'smem constant byte address 0x4 - core index']
  #allocation1 [shape = 'u32[72,128]{1,0:T(1,128)}', space=vmem, size = 0x9000, scoped, tag = 'internal scratch']
  %s0 = inlined_call_operand.hbm [shape: f32[16,128], index: 0, kind: input, shape index: {}]
  %s1 = inlined_call_operand.hbm [shape: f32[128,128], index: 1, kind: input, shape index: {}]
  %s2 = inlined_call_operand.vmem [shape: f32[1,128], index: 2, kind: input, shape index: {}]
  %s3 = inlined_call_operand.hbm [shape: f32[16,128], index: 3, kind: output, shape index: {}]
  %s4 = sld [smem:[#allocation0]]
  $region30: #{tpu_custom_call.1} parent=0
    _
  %s6 = ssub.s32 1, %s4
  %s7 = scalar_select 0, %s6, %s4
  $region1: #{tpu_custom_call.1} parent=0
    #allocation2 [shape = 'u8[8192]{0}', space=vmem, size = 0x2000, scoped, tag = 'input window, operand 0, single buffered']
    #allocation3 [shape = 's32[1]{0}', space=sflag, size = 0x4, scoped, tag = 'scoped memory for tpu_custom_call.1']
    #allocation4 [shape = 's32[1]{0}', space=sflag, size = 0x4, scoped, tag = 'scoped memory for tpu_custom_call.1']
    #allocation5 [shape = 'u8[65536]{0}', space=vmem, size = 0x10000, scoped, tag = 'input window, operand 1, single buffered']
    #allocation6 [shape = 's32[1]{0}', space=sflag, size = 0x4, scoped, tag = 'scoped memory for tpu_custom_call.1']
    #allocation7 [shape = 'u8[8192]{0}', space=vmem, size = 0x2000, scoped, tag = 'output window, operand 0, single buffered']
    %8 = vsyncpa [#allocation3], 0
    %9 = vsyncpa [#allocation6], 0
    %10 = vsyncpa [#allocation4], 0
    // Predicated region
    $region2: #{tpu_custom_call.1} parent=1 // pred_check
      _
    $region3: #{tpu_custom_call.1} parent=1 // pred_check_branch
      %12 = sbr.rel (0) target = $region5
    $region4: #{tpu_custom_call.1} parent=1 // pred_region
      %14 = vsyncadd [#allocation3], 0
      %s15 = sshll.u32 %s0, 4
      %s16 = int_to_ptr.hbm [resolvable:$true] %s15
      %s17 = sshll.u32 [#allocation2], 4
      %s18 = int_to_ptr.vmem [resolvable:$true] %s17
      %23 = dma.hbm_to_vmem [thread:$0]  %s16, 256, %s18, [#allocation3], 128, 128, 8
    $region5: #{tpu_custom_call.1} parent=1 // pred_fallthru
      _
    // Predicated region
    $region6: #{tpu_custom_call.1} parent=1 // pred_check
      _
    $region7: #{tpu_custom_call.1} parent=1 // pred_check_branch
      %25 = sbr.rel (0) target = $region9
    $region8: #{tpu_custom_call.1} parent=1 // pred_region
      %27 = vsyncadd [#allocation6], 0
      %s28 = sshll.u32 %s1, 4
      %s29 = int_to_ptr.hbm [resolvable:$true] %s28
      %s30 = sshll.u32 [#allocation5], 4
      %s31 = int_to_ptr.vmem [resolvable:$true] %s30
      %36 = dma.hbm_to_vmem [thread:$0]  %s29, 2048, %s31, [#allocation6], 128, 128, 8
    $region9: #{tpu_custom_call.1} parent=1 // pred_fallthru
      _
    // Predicated region
    $region10: #{tpu_custom_call.1} parent=1 // pred_check
      _
    $region11: #{tpu_custom_call.1} parent=1 // pred_check_branch
      %38 = sbr.rel (0) target = $region13
    $region12: #{tpu_custom_call.1} parent=1 // pred_region
      _
    $region13: #{tpu_custom_call.1} parent=1 // pred_fallthru
      _
    // Predicated region
    $region14: #{tpu_custom_call.1} parent=1 // pred_check
      _
    $region15: #{tpu_custom_call.1} parent=1 // pred_check_branch
      %40 = sbr.rel (0) target = $region17
    $region16: #{tpu_custom_call.1} parent=1 // pred_region
      %42 = dma.done [#allocation3], 256
    $region17: #{tpu_custom_call.1} parent=1 // pred_fallthru
      _
    // Predicated region
    $region18: #{tpu_custom_call.1} parent=1 // pred_check
      _
    $region19: #{tpu_custom_call.1} parent=1 // pred_check_branch
      %44 = sbr.rel (0) target = $region21
    $region20: #{tpu_custom_call.1} parent=1 // pred_region
      %46 = dma.done [#allocation6], 2048
    $region21: #{tpu_custom_call.1} parent=1 // pred_fallthru
      _
    %v47 = vld [vmem:[#allocation2] sm:$0xff]
    %v48 = vld [vmem:[#allocation2 + $0x8] sm:$0xff]
    %v49 = vld [vmem:[#allocation5] sm:$0xff]
    %v50 = vld [vmem:[#allocation5 + $0x8] sm:$0xff]
    %v51 = vld [vmem:[#allocation5 + $0x10] sm:$0xff]
    %v52 = vld [vmem:[#allocation5 + $0x18] sm:$0xff]
    %v53 = vld [vmem:[#allocation5 + $0x20] sm:$0xff]
    %v54 = vld [vmem:[#allocation5 + $0x28] sm:$0xff]
    %v55 = vld [vmem:[#allocation5 + $0x30] sm:$0xff]
    %v56 = vld [vmem:[#allocation5 + $0x38] sm:$0xff]
    %v57 = vld [vmem:[#allocation5 + $0x40] sm:$0xff]
    %v58 = vld [vmem:[#allocation5 + $0x48] sm:$0xff]
    %v59 = vld [vmem:[#allocation5 + $0x50] sm:$0xff]
    %v60 = vld [vmem:[#allocation5 + $0x58] sm:$0xff]
    %v61 = vld [vmem:[#allocation5 + $0x60] sm:$0xff]
    %v62 = vld [vmem:[#allocation5 + $0x68] sm:$0xff]
    %v63 = vld [vmem:[#allocation5 + $0x70] sm:$0xff]
    %v64 = vld [vmem:[#allocation5 + $0x78] sm:$0xff]
    %v65 = vld [vmem:[%s2] sm:$0x1]
    %v67 = vperm.slane %v65, 0
    %69 = vmatpush.msra.mxu0 %v64
    %70 = vmatpush.msra.mxu0 %v63
    %71 = vmatpush.msra.mxu0 %v62
    %72 = vmatpush.msra.mxu0 %v61
    %73 = vmatpush.msra.mxu0 %v60
    %74 = vmatpush.msra.mxu0 %v59
    %75 = vmatpush.msra.mxu0 %v58
    %76 = vmatpush.msra.mxu0 %v57
    %77 = vmatpush.msra.mxu0 %v56
    %78 = vmatpush.msra.mxu0 %v55
    %79 = vmatpush.msra.mxu0 %v54
    %80 = vmatpush.msra.mxu0 %v53
    %81 = vmatpush.msra.mxu0 %v52
    %82 = vmatpush.msra.mxu0 %v51
    %83 = vmatpush.msra.mxu0 %v50
    %84 = vmatpush.msra.mxu0 %v49
    %85 = vmatmul.f32.gmra.mxu0 %v47
    %v86 = vpop.f32.mrf.mxu0
    %v87 = vadd.f32 %v67, %v86
    %88 = vmatmul.f32.gmra.mxu0 %v48
    %v89 = vpop.f32.mrf.mxu0
    %v90 = vadd.f32 %v67, %v89
    %91 = vdwg.mxu0
    %v92 = vmul.f32 %v87, 0.5
    %v93 = vmul.f32 %v90, 0.5
    %v94 = vmul.f32 %v87, 0.70710677
    %v95 = vmul.f32 %v90, 0.70710677
    %v96 = vmul.f32 %v94, %v94
    %v97 = vmin.f32 16.0, %v96
    %v98 = vmul.f32 %v97, 2.1237322e-06
    %v99 = vadd.f32 %v98, 0.00028619796
    %v100 = vmul.f32 %v97, %v99
    %v101 = vadd.f32 %v100, 0.0036580483
    %v102 = vmul.f32 %v97, %v101
    %v103 = vadd.f32 %v102, 0.05243302
    %v104 = vmul.f32 %v97, %v103
    %v105 = vadd.f32 %v104, 0.18741608
    %v106 = vmul.f32 %v97, %v105
    %v107 = vadd.f32 %v106, 1.1283791
    %v108 = vmul.f32 %v94, %v107
    %v109 = vmul.f32 %v97, 3.8918573e-05
    %v110 = vadd.f32 %v109, 0.001143296
    %v111 = vmul.f32 %v97, %v110
    %v112 = vadd.f32 %v111, 0.014752088
    %v113 = vmul.f32 %v97, %v112
    %v114 = vadd.f32 %v113, 0.112945676
    %v115 = vmul.f32 %v97, %v114
    %v116 = vadd.f32 %v115, 0.4994258
    %v117 = vmul.f32 %v97, %v116
    %v118 = vadd.f32 %v117, 1.0
    %v119 = vrcp.pop %v118
    %v120 = vmul.f32 %v118, %v119
    %v121 = vsub.f32 1.0, %v120
    %v122 = vmul.f32 %v119, %v121
    %v123 = vadd.f32 %v119, %v122
    %vm124 = vweird.f32 %v118
    %vm125 = vweird.f32 %v119
    %vm126 = vmor %vm124, %vm125
    %v127 = vsel %vm126, %v119, %v123
    %v128 = vand.u32 2147483647, %v118
    %vm129 = vcmp.eq.f32.partialorder %v128, 8.507059e+37
    %v130 = vand.u32 %v118, 2147483648
    %v131 = vor.u32 1.1754944e-38, %v130
    %v132 = vsel %vm129, %v131, %v127
    %v133 = vmul.f32 %v108, %v132
    %v134 = vmin.f32 %v133, 1.0
    %v135 = vmax.f32 %v134, -1.0
    %v136 = vmul.f32 %v95, %v95
    %v137 = vmin.f32 16.0, %v136
    %v138 = vmul.f32 %v137, 2.1237322e-06
    %v139 = vadd.f32 %v138, 0.00028619796
    %v140 = vmul.f32 %v137, %v139
    %v141 = vadd.f32 %v140, 0.0036580483
    %v142 = vmul.f32 %v137, %v141
    %v143 = vadd.f32 %v142, 0.05243302
    %v144 = vmul.f32 %v137, %v143
    %v145 = vadd.f32 %v144, 0.18741608
    %v146 = vmul.f32 %v137, %v145
    %v147 = vadd.f32 %v146, 1.1283791
    %v148 = vmul.f32 %v95, %v147
    %v149 = vmul.f32 %v137, 3.8918573e-05
    %v150 = vadd.f32 %v149, 0.001143296
    %v151 = vmul.f32 %v137, %v150
    %v152 = vadd.f32 %v151, 0.014752088
    %v153 = vmul.f32 %v137, %v152
    %v154 = vadd.f32 %v153, 0.112945676
    %v155 = vmul.f32 %v137, %v154
    %v156 = vadd.f32 %v155, 0.4994258
    %v157 = vmul.f32 %v137, %v156
    %v158 = vadd.f32 %v157, 1.0
    %v159 = vrcp.pop %v158
    %v160 = vmul.f32 %v158, %v159
    %v161 = vsub.f32 1.0, %v160
    %v162 = vmul.f32 %v159, %v161
    %v163 = vadd.f32 %v159, %v162
    %vm164 = vweird.f32 %v158
    %vm165 = vweird.f32 %v159
    %vm166 = vmor %vm164, %vm165
    %v167 = vsel %vm166, %v159, %v163
    %v168 = vand.u32 2147483647, %v158
    %vm169 = vcmp.eq.f32.partialorder %v168, 8.507059e+37
    %v170 = vand.u32 %v158, 2147483648
    %v171 = vor.u32 1.1754944e-38, %v170
    %v172 = vsel %vm169, %v171, %v167
    %v173 = vmul.f32 %v148, %v172
    %v174 = vmin.f32 %v173, 1.0
    %v175 = vmax.f32 %v174, -1.0
    %v176 = vadd.f32 %v135, 1.0
    %v177 = vadd.f32 %v175, 1.0
    %v178 = vmul.f32 %v92, %v176
    %v179 = vmul.f32 %v93, %v177
    %180 = vst [vmem:[#allocation7] sm:$0xff] %v178
    %181 = vst [vmem:[#allocation7 + $0x8] sm:$0xff] %v179
    // Predicated region
    $region22: #{tpu_custom_call.1} parent=1 // pred_check
      _
    $region23: #{tpu_custom_call.1} parent=1 // pred_check_branch
      %183 = sbr.rel (0) target = $region25
    $region24: #{tpu_custom_call.1} parent=1 // pred_region
      %185 = vsyncadd [#allocation4], 0
      %s186 = sshll.u32 [#allocation7], 4
      %s187 = int_to_ptr.vmem [resolvable:$true] %s186
      %s188 = sshll.u32 %s3, 4
      %s189 = int_to_ptr.hbm [resolvable:$true] %s188
      %194 = dma.vmem_to_hbm [thread:$0]  %s187, 256, %s189, [#allocation4], 128, 128, 8
    $region25: #{tpu_custom_call.1} parent=1 // pred_fallthru
      _
    // Predicated region
    $region26: #{tpu_custom_call.1} parent=1 // pred_check
      _
    $region27: #{tpu_custom_call.1} parent=1 // pred_check_branch
      %196 = sbr.rel (0) target = $region29
    $region28: #{tpu_custom_call.1} parent=1 // pred_region
      %198 = dma.done [#allocation4], 256
    $region29: #{tpu_custom_call.1} parent=1 // pred_fallthru
      _
    %199 = vsyncpa [#allocation3], 1
    %200 = vsyncpa [#allocation6], 1
    %201 = vsyncpa [#allocation4], 1

</llo_original>
